<compile_context>
chip_gen: v6e
topology: v6e:2x2x1
jax: 0.10.0
libtpu: 0.0.40
codegen_flags: <defaults>
</compile_context>

<pallas_src>
import functools

import jax
import jax.numpy as jnp
from jax.experimental import pallas as pl
from jax.experimental.pallas import tpu as pltpu

# ----------------------------- configuration --------------------------------
NUM_BLOCKS = 3            # num_blocks
NUM_LAYERS = 3            # num_layers (FC layers per block, each + ReLU)
EXOGENOUS_DIM = 0         # no exogenous inputs (TREND stack)
LAYER_WIDTH = 32          # layer_width
NR_PARAMS = 1             # nr_params (the basis fold below assumes 1)
ECD = 4                   # expansion_coefficient_dim
INPUT_CHUNK_LENGTH = 16   # input_chunk_length
TARGET_LENGTH = 8         # target_length
BATCH = 16
BATCH_TILE = BATCH        # whole batch in one grid step (grid=(1,))


# ------------------------------ Pallas kernel --------------------------------
def _stack_kernel(xp_ref, w0_ref, b0_ref, wh_ref, bh_ref, m_ref, c_ref,
                  wfork_ref, bfork_ref, out_ref, *, num_blocks, num_hidden,
                  l_in):
    """Entire _Stack.forward (shared-weight residual loop), one grid step.

    xp_ref : (TB, L_in + T)  input x zero-padded on the forecast lanes
    out_ref: (TB, L_in + T)  [residual | forecast] merged output slab
    """
    tb = xp_ref.shape[0]
    x_pad = xp_ref[...].astype(jnp.float32)                # (TB, L+T)
    x = x_pad[:, :l_in]                                    # static slice -> (TB, L)

    # ---- preamble: load weights once; hoist bias broadcasts out of the loop.
    w0 = w0_ref[...]                                       # (L, W)
    m_mat = m_ref[...]                                     # (W, W)  = Wbk' @ w0
    wfork = wfork_ref[...]                                 # (W, L+T) = [-Wbk' | Wfc']
    whs = [wh_ref[l] for l in range(num_hidden)]           # each (W, W)
    width = w0.shape[1]
    b0b = jnp.broadcast_to(b0_ref[...], (tb, width))
    cb = jnp.broadcast_to(c_ref[...], (tb, width))         # (1,W) = bbk' @ w0
    bhbs = [jnp.broadcast_to(bh_ref[l], (tb, width)) for l in range(num_hidden)]
    bforkb = jnp.broadcast_to(bfork_ref[...], (tb, wfork.shape[1]))

    # ---- residual-algebra fold: carry xw0 = x_k @ w0 and sum of hidden acts.
    xw0 = jnp.dot(x, w0, preferred_element_type=jnp.float32)      # (TB, W)
    sum_h = jnp.zeros((tb, width), jnp.float32)

    for blk in range(num_blocks):                          # shared block weights
        h = jnp.maximum(xw0 + b0b, 0.0)
        for l in range(num_hidden):
            h = jnp.maximum(
                jnp.dot(h, whs[l], preferred_element_type=jnp.float32)
                + bhbs[l], 0.0)
        sum_h = sum_h + h
        if blk < num_blocks - 1:
            # x_{k+1} @ w0 = x_k @ w0 - (h @ Wbk' + bbk') @ w0
            xw0 = xw0 - (jnp.dot(h, m_mat, preferred_element_type=jnp.float32)
                         + cb)

    # Single fused fork on the accumulated hidden state; bias carries the
    # NUM_BLOCKS factor and the backcast half is sign-flipped, so adding the
    # padded input yields [residual | forecast] in one lane-contiguous slab.
    out = x_pad + jnp.dot(sum_h, wfork,
                          preferred_element_type=jnp.float32) + bforkb
    out_ref[...] = out.astype(out_ref.dtype)               # one 24-lane store


def nbeats_stack_forward(x, params):
    """x: (B, input_chunk_length) -> (residual (B, L), forecast (B, T, nr_params))."""
    (w0, b0, wh, bh, wbk, bbk, wfc, bfc, bk_basis, fc_basis) = params
    B, L = x.shape
    T = fc_basis.shape[1]
    W = w0.shape[1]
    n_hidden = wh.shape[0]
    assert NR_PARAMS == 1, "basis fold below assumes nr_params == 1"

    # Fold the fixed TrendBasis into the forking layers (one-time, outside the
    # kernel):  (h @ wbk + bbk) @ bk_basis == h @ (wbk @ bk_basis) + bbk @ bk_basis
    wbk_eff = wbk @ bk_basis                               # (W, L)
    bbk_eff = bbk @ bk_basis                               # (1, L)
    wfc_eff = wfc @ fc_basis                               # (W, T)
    bfc_eff = bfc @ fc_basis                               # (1, T)

    # Fused fork applied ONCE on sum_h: backcast half negated, biases carry
    # the NUM_BLOCKS factor (each block adds one bias contribution).
    w_fork = jnp.concatenate([-wbk_eff, wfc_eff], axis=1)                    # (W, L+T)
    b_fork = jnp.concatenate([-NUM_BLOCKS * bbk_eff,
                              NUM_BLOCKS * bfc_eff], axis=1)                 # (1, L+T)

    # Residual-propagation fold: x_{k+1}@w0 = x_k@w0 - h_k@M - c
    m_mat = wbk_eff @ w0                                   # (W, W)
    c_vec = bbk_eff @ w0                                   # (1, W)

    # Zero-pad x on the forecast lanes so the kernel emits one merged slab.
    x_pad = jnp.pad(x, ((0, 0), (0, T)))                   # (B, L+T)

    tb = BATCH_TILE if BATCH_TILE <= B else B
    assert B % tb == 0, "batch must be divisible by the batch tile"
    grid = (B // tb,)                                      # = (1,)

    kernel = functools.partial(_stack_kernel,
                               num_blocks=NUM_BLOCKS,
                               num_hidden=n_hidden,
                               l_in=L)

    rep2 = lambda i: (0, 0)
    rep3 = lambda i: (0, 0, 0)
    out = pl.pallas_call(
        kernel,
        out_shape=jax.ShapeDtypeStruct((B, L + T), x.dtype),
        grid=grid,
        in_specs=[
            pl.BlockSpec((tb, L + T), lambda i: (i, 0)),      # padded x
            pl.BlockSpec((L, W), rep2),                       # w0
            pl.BlockSpec((1, W), rep2),                       # b0
            pl.BlockSpec((n_hidden, W, W), rep3),             # hidden weights
            pl.BlockSpec((n_hidden, 1, W), rep3),             # hidden biases
            pl.BlockSpec((W, W), rep2),                       # M = Wbk' @ w0
            pl.BlockSpec((1, W), rep2),                       # c = bbk' @ w0
            pl.BlockSpec((W, L + T), rep2),                   # fused fork weight
            pl.BlockSpec((1, L + T), rep2),                   # fused fork bias
        ],
        out_specs=pl.BlockSpec((tb, L + T), lambda i: (i, 0)),
        compiler_params=pltpu.CompilerParams(
            dimension_semantics=("arbitrary",)),
    )(x_pad, w0, b0, wh, bh, m_mat, c_vec, w_fork, b_fork)

    residual = out[:, :L]
    forecast = out[:, L:].reshape(B, T, NR_PARAMS)
    return residual, forecast


# --------------------------- parameter construction --------------------------
def _linear_params(key, fan_in, fan_out):
    """Deterministic PyTorch-Linear-style init, stored transposed (in, out)."""
    kw, kb = jax.random.split(key)
    bound = 1.0 / jnp.sqrt(jnp.float32(fan_in))
    w = jax.random.uniform(kw, (fan_in, fan_out), jnp.float32, -bound, bound)
    b = jax.random.uniform(kb, (1, fan_out), jnp.float32, -bound, bound)
    return w, b


def make_params(key):
    keys = jax.random.split(key, 4 + (NUM_LAYERS - 1))
    # first FC layer: Linear(input_chunk_length, layer_width)
    w0, b0 = _linear_params(keys[0], INPUT_CHUNK_LENGTH, LAYER_WIDTH)
    # hidden FC layers: Linear(layer_width, layer_width) x (num_layers - 1)
    whs, bhs = [], []
    for i in range(NUM_LAYERS - 1):
        w, b = _linear_params(keys[1 + i], LAYER_WIDTH, LAYER_WIDTH)
        whs.append(w)
        bhs.append(b)
    wh = jnp.stack(whs, axis=0)                      # (num_layers-1, W, W)
    bh = jnp.stack(bhs, axis=0)                      # (num_layers-1, 1, W)
    # forking layers (TREND): Linear(W, ecd) and Linear(W, nr_params*ecd)
    wbk, bbk = _linear_params(keys[NUM_LAYERS], LAYER_WIDTH, ECD)
    wfc, bfc = _linear_params(keys[NUM_LAYERS + 1], LAYER_WIDTH, NR_PARAMS * ECD)
    # TrendBasis: basis[i, t] = (t / seq_len)**i  -> shape (ecd, seq_len)
    t_in = jnp.arange(INPUT_CHUNK_LENGTH, dtype=jnp.float32) / INPUT_CHUNK_LENGTH
    t_out = jnp.arange(TARGET_LENGTH, dtype=jnp.float32) / TARGET_LENGTH
    bk_basis = jnp.stack([t_in ** i for i in range(ECD)], axis=0)   # (ecd, L_in)
    fc_basis = jnp.stack([t_out ** i for i in range(ECD)], axis=0)  # (ecd, T)
    return (w0, b0, wh, bh, wbk, bbk, wfc, bfc, bk_basis, fc_basis)


# ------------------------------ pure-JAX reference ---------------------------
def ref_stack_forward(x, params):
    """Unfolded reference matching the original PyTorch _Stack.forward."""
    (w0, b0, wh, bh, wbk, bbk, wfc, bfc, bk_basis, fc_basis) = params
    B = x.shape[0]
    fcst = jnp.zeros((B, TARGET_LENGTH), jnp.float32)
    xx = x
    for _ in range(NUM_BLOCKS):
        h = jax.nn.relu(xx @ w0 + b0)
        for l in range(NUM_LAYERS - 1):
            h = jax.nn.relu(h @ wh[l] + bh[l])
        theta_b = h @ wbk + bbk
        theta_f = h @ wfc + bfc
        x_hat = theta_b @ bk_basis
        y_hat = theta_f @ fc_basis
        fcst = fcst + y_hat
        xx = xx - x_hat
    return xx, fcst.reshape(B, TARGET_LENGTH, NR_PARAMS)


# ----------------------------------- main -------------------------------------
if __name__ == "__main__":
    key = jax.random.PRNGKey(0)
    kx, kp = jax.random.split(key)
    x = jax.random.normal(kx, (BATCH, INPUT_CHUNK_LENGTH), jnp.float32)
    params = make_params(kp)

    residual, forecast = nbeats_stack_forward(x, params)
    residual = jax.block_until_ready(residual)
    forecast = jax.block_until_ready(forecast)

    ref_res, ref_fcst = ref_stack_forward(x, params)
    assert residual.shape == (BATCH, INPUT_CHUNK_LENGTH)
    assert forecast.shape == (BATCH, TARGET_LENGTH, NR_PARAMS)
    assert jnp.allclose(residual, ref_res, rtol=1e-5, atol=1e-5)
    assert jnp.allclose(forecast, ref_fcst, rtol=1e-5, atol=1e-5)

    print("KERNEL_OK")
</pallas_src>

<mosaic_0001>
module attributes {stable_mosaic.version = 11 : i64} {
  func.func @_stack_kernel(%arg0: i32, %arg1: memref<16x24xf32, #tpu.memory_space<vmem>>, %arg2: memref<16x32xf32, #tpu.memory_space<vmem>>, %arg3: memref<1x32xf32, #tpu.memory_space<vmem>>, %arg4: memref<2x32x32xf32, #tpu.memory_space<vmem>>, %arg5: memref<2x1x32xf32, #tpu.memory_space<vmem>>, %arg6: memref<32x32xf32, #tpu.memory_space<vmem>>, %arg7: memref<1x32xf32, #tpu.memory_space<vmem>>, %arg8: memref<32x24xf32, #tpu.memory_space<vmem>>, %arg9: memref<1x24xf32, #tpu.memory_space<vmem>>, %arg10: memref<16x24xf32, #tpu.memory_space<vmem>>) attributes {dimension_semantics = [#tpu.dimension_semantics<arbitrary>], iteration_bounds = array<i64: 1>, scalar_prefetch = 0 : i64, scratch_operands = 0 : i64, tpu.core_type = #tpu.core_type<tc>, window_params = [{transform_indices = @transform_0, window_bounds = array<i64: 16, 24>}, {pipeline_mode = #tpu.pipeline_mode<synchronous>, transform_indices = @transform_1, window_bounds = array<i64: 16, 32>}, {pipeline_mode = #tpu.pipeline_mode<synchronous>, transform_indices = @transform_2, window_bounds = array<i64: 1, 32>}, {pipeline_mode = #tpu.pipeline_mode<synchronous>, transform_indices = @transform_3, window_bounds = array<i64: 2, 32, 32>}, {pipeline_mode = #tpu.pipeline_mode<synchronous>, transform_indices = @transform_4, window_bounds = array<i64: 2, 1, 32>}, {pipeline_mode = #tpu.pipeline_mode<synchronous>, transform_indices = @transform_5, window_bounds = array<i64: 32, 32>}, {pipeline_mode = #tpu.pipeline_mode<synchronous>, transform_indices = @transform_6, window_bounds = array<i64: 1, 32>}, {pipeline_mode = #tpu.pipeline_mode<synchronous>, transform_indices = @transform_7, window_bounds = array<i64: 32, 24>}, {pipeline_mode = #tpu.pipeline_mode<synchronous>, transform_indices = @transform_8, window_bounds = array<i64: 1, 24>}, {transform_indices = @transform_9, window_bounds = array<i64: 16, 24>}]} {
    %c0 = arith.constant 0 : index
    %c0_0 = arith.constant 0 : index
    %0 = vector.load %arg1[%c0, %c0_0] : memref<16x24xf32, #tpu.memory_space<vmem>>, vector<16x24xf32>
    %1 = vector.extract_strided_slice %0 {offsets = [0, 0], sizes = [16, 16], strides = [1, 1]} : vector<16x24xf32> to vector<16x16xf32>
    %c0_1 = arith.constant 0 : index
    %c0_2 = arith.constant 0 : index
    %2 = vector.load %arg2[%c0_1, %c0_2] : memref<16x32xf32, #tpu.memory_space<vmem>>, vector<16x32xf32>
    %c0_3 = arith.constant 0 : index
    %c0_4 = arith.constant 0 : index
    %3 = vector.load %arg6[%c0_3, %c0_4] : memref<32x32xf32, #tpu.memory_space<vmem>>, vector<32x32xf32>
    %c0_5 = arith.constant 0 : index
    %c0_6 = arith.constant 0 : index
    %4 = vector.load %arg8[%c0_5, %c0_6] : memref<32x24xf32, #tpu.memory_space<vmem>>, vector<32x24xf32>
    %c0_7 = arith.constant 0 : index
    %c0_8 = arith.constant 0 : index
    %c0_9 = arith.constant 0 : index
    %5 = vector.load %arg4[%c0_7, %c0_8, %c0_9] : memref<2x32x32xf32, #tpu.memory_space<vmem>>, vector<1x32x32xf32>
    %6 = vector.shape_cast %5 : vector<1x32x32xf32> to vector<32x32xf32>
    %c1 = arith.constant 1 : index
    %c0_10 = arith.constant 0 : index
    %c0_11 = arith.constant 0 : index
    %7 = vector.load %arg4[%c1, %c0_10, %c0_11] : memref<2x32x32xf32, #tpu.memory_space<vmem>>, vector<1x32x32xf32>
    %8 = vector.shape_cast %7 : vector<1x32x32xf32> to vector<32x32xf32>
    %c0_12 = arith.constant 0 : index
    %c0_13 = arith.constant 0 : index
    %9 = vector.load %arg3[%c0_12, %c0_13] : memref<1x32xf32, #tpu.memory_space<vmem>>, vector<1x32xf32>
    %10 = vector.shape_cast %9 : vector<1x32xf32> to vector<1x32xf32>
    %11 = vector.broadcast %10 : vector<1x32xf32> to vector<16x32xf32>
    %c0_14 = arith.constant 0 : index
    %c0_15 = arith.constant 0 : index
    %12 = vector.load %arg7[%c0_14, %c0_15] : memref<1x32xf32, #tpu.memory_space<vmem>>, vector<1x32xf32>
    %13 = vector.shape_cast %12 : vector<1x32xf32> to vector<1x32xf32>
    %14 = vector.broadcast %13 : vector<1x32xf32> to vector<16x32xf32>
    %c0_16 = arith.constant 0 : index
    %c0_17 = arith.constant 0 : index
    %c0_18 = arith.constant 0 : index
    %15 = vector.load %arg5[%c0_16, %c0_17, %c0_18] : memref<2x1x32xf32, #tpu.memory_space<vmem>>, vector<1x1x32xf32>
    %16 = vector.shape_cast %15 : vector<1x1x32xf32> to vector<1x32xf32>
    %17 = vector.shape_cast %16 : vector<1x32xf32> to vector<1x32xf32>
    %18 = vector.broadcast %17 : vector<1x32xf32> to vector<16x32xf32>
    %c1_19 = arith.constant 1 : index
    %c0_20 = arith.constant 0 : index
    %c0_21 = arith.constant 0 : index
    %19 = vector.load %arg5[%c1_19, %c0_20, %c0_21] : memref<2x1x32xf32, #tpu.memory_space<vmem>>, vector<1x1x32xf32>
    %20 = vector.shape_cast %19 : vector<1x1x32xf32> to vector<1x32xf32>
    %21 = vector.shape_cast %20 : vector<1x32xf32> to vector<1x32xf32>
    %22 = vector.broadcast %21 : vector<1x32xf32> to vector<16x32xf32>
    %c0_22 = arith.constant 0 : index
    %c0_23 = arith.constant 0 : index
    %23 = vector.load %arg9[%c0_22, %c0_23] : memref<1x24xf32, #tpu.memory_space<vmem>>, vector<1x24xf32>
    %24 = vector.shape_cast %23 : vector<1x24xf32> to vector<1x24xf32>
    %25 = vector.broadcast %24 : vector<1x24xf32> to vector<16x24xf32>
    %cst = arith.constant dense<0.000000e+00> : vector<16x32xf32>
    %26 = tpu.matmul %1, %2, %cst {dimension_numbers = #tpu.dot_dimension_numbers<[1], [0], [0], [1], [0, 0, 1, 1], [], []>} : vector<16x16xf32>, vector<16x32xf32>, vector<16x32xf32> -> vector<16x32xf32>
    %cst_24 = arith.constant 0.000000e+00 : f32
    %27 = vector.broadcast %cst_24 : f32 to vector<16x32xf32>
    %28 = arith.addf %26, %11 : vector<16x32xf32>
    %cst_25 = arith.constant 0.000000e+00 : f32
    %29 = vector.broadcast %cst_25 : f32 to vector<16x32xf32>
    %30 = arith.maximumf %28, %29 : vector<16x32xf32>
    %cst_26 = arith.constant dense<0.000000e+00> : vector<16x32xf32>
    %31 = tpu.matmul %30, %6, %cst_26 {dimension_numbers = #tpu.dot_dimension_numbers<[1], [0], [0], [1], [0, 0, 1, 1], [], []>} : vector<16x32xf32>, vector<32x32xf32>, vector<16x32xf32> -> vector<16x32xf32>
    %32 = arith.addf %31, %18 : vector<16x32xf32>
    %cst_27 = arith.constant 0.000000e+00 : f32
    %33 = vector.broadcast %cst_27 : f32 to vector<16x32xf32>
    %34 = arith.maximumf %32, %33 : vector<16x32xf32>
    %cst_28 = arith.constant dense<0.000000e+00> : vector<16x32xf32>
    %35 = tpu.matmul %34, %8, %cst_28 {dimension_numbers = #tpu.dot_dimension_numbers<[1], [0], [0], [1], [0, 0, 1, 1], [], []>} : vector<16x32xf32>, vector<32x32xf32>, vector<16x32xf32> -> vector<16x32xf32>
    %36 = arith.addf %35, %22 : vector<16x32xf32>
    %cst_29 = arith.constant 0.000000e+00 : f32
    %37 = vector.broadcast %cst_29 : f32 to vector<16x32xf32>
    %38 = arith.maximumf %36, %37 : vector<16x32xf32>
    %39 = arith.addf %27, %38 : vector<16x32xf32>
    %cst_30 = arith.constant dense<0.000000e+00> : vector<16x32xf32>
    %40 = tpu.matmul %38, %3, %cst_30 {dimension_numbers = #tpu.dot_dimension_numbers<[1], [0], [0], [1], [0, 0, 1, 1], [], []>} : vector<16x32xf32>, vector<32x32xf32>, vector<16x32xf32> -> vector<16x32xf32>
    %41 = arith.addf %40, %14 : vector<16x32xf32>
    %42 = arith.subf %26, %41 : vector<16x32xf32>
    %43 = arith.addf %42, %11 : vector<16x32xf32>
    %cst_31 = arith.constant 0.000000e+00 : f32
    %44 = vector.broadcast %cst_31 : f32 to vector<16x32xf32>
    %45 = arith.maximumf %43, %44 : vector<16x32xf32>
    %cst_32 = arith.constant dense<0.000000e+00> : vector<16x32xf32>
    %46 = tpu.matmul %45, %6, %cst_32 {dimension_numbers = #tpu.dot_dimension_numbers<[1], [0], [0], [1], [0, 0, 1, 1], [], []>} : vector<16x32xf32>, vector<32x32xf32>, vector<16x32xf32> -> vector<16x32xf32>
    %47 = arith.addf %46, %18 : vector<16x32xf32>
    %cst_33 = arith.constant 0.000000e+00 : f32
    %48 = vector.broadcast %cst_33 : f32 to vector<16x32xf32>
    %49 = arith.maximumf %47, %48 : vector<16x32xf32>
    %cst_34 = arith.constant dense<0.000000e+00> : vector<16x32xf32>
    %50 = tpu.matmul %49, %8, %cst_34 {dimension_numbers = #tpu.dot_dimension_numbers<[1], [0], [0], [1], [0, 0, 1, 1], [], []>} : vector<16x32xf32>, vector<32x32xf32>, vector<16x32xf32> -> vector<16x32xf32>
    %51 = arith.addf %50, %22 : vector<16x32xf32>
    %cst_35 = arith.constant 0.000000e+00 : f32
    %52 = vector.broadcast %cst_35 : f32 to vector<16x32xf32>
    %53 = arith.maximumf %51, %52 : vector<16x32xf32>
    %54 = arith.addf %39, %53 : vector<16x32xf32>
    %cst_36 = arith.constant dense<0.000000e+00> : vector<16x32xf32>
    %55 = tpu.matmul %53, %3, %cst_36 {dimension_numbers = #tpu.dot_dimension_numbers<[1], [0], [0], [1], [0, 0, 1, 1], [], []>} : vector<16x32xf32>, vector<32x32xf32>, vector<16x32xf32> -> vector<16x32xf32>
    %56 = arith.addf %55, %14 : vector<16x32xf32>
    %57 = arith.subf %42, %56 : vector<16x32xf32>
    %58 = arith.addf %57, %11 : vector<16x32xf32>
    %cst_37 = arith.constant 0.000000e+00 : f32
    %59 = vector.broadcast %cst_37 : f32 to vector<16x32xf32>
    %60 = arith.maximumf %58, %59 : vector<16x32xf32>
    %cst_38 = arith.constant dense<0.000000e+00> : vector<16x32xf32>
    %61 = tpu.matmul %60, %6, %cst_38 {dimension_numbers = #tpu.dot_dimension_numbers<[1], [0], [0], [1], [0, 0, 1, 1], [], []>} : vector<16x32xf32>, vector<32x32xf32>, vector<16x32xf32> -> vector<16x32xf32>
    %62 = arith.addf %61, %18 : vector<16x32xf32>
    %cst_39 = arith.constant 0.000000e+00 : f32
    %63 = vector.broadcast %cst_39 : f32 to vector<16x32xf32>
    %64 = arith.maximumf %62, %63 : vector<16x32xf32>
    %cst_40 = arith.constant dense<0.000000e+00> : vector<16x32xf32>
    %65 = tpu.matmul %64, %8, %cst_40 {dimension_numbers = #tpu.dot_dimension_numbers<[1], [0], [0], [1], [0, 0, 1, 1], [], []>} : vector<16x32xf32>, vector<32x32xf32>, vector<16x32xf32> -> vector<16x32xf32>
    %66 = arith.addf %65, %22 : vector<16x32xf32>
    %cst_41 = arith.constant 0.000000e+00 : f32
    %67 = vector.broadcast %cst_41 : f32 to vector<16x32xf32>
    %68 = arith.maximumf %66, %67 : vector<16x32xf32>
    %69 = arith.addf %54, %68 : vector<16x32xf32>
    %cst_42 = arith.constant dense<0.000000e+00> : vector<16x24xf32>
    %70 = tpu.matmul %69, %4, %cst_42 {dimension_numbers = #tpu.dot_dimension_numbers<[1], [0], [0], [1], [0, 0, 1, 1], [], []>} : vector<16x32xf32>, vector<32x24xf32>, vector<16x24xf32> -> vector<16x24xf32>
    %71 = arith.addf %0, %70 : vector<16x24xf32>
    %72 = arith.addf %71, %25 : vector<16x24xf32>
    %c0_43 = arith.constant 0 : index
    %c0_44 = arith.constant 0 : index
    %73 = vector.load %arg10[%c0_43, %c0_44] : memref<16x24xf32, #tpu.memory_space<vmem>>, vector<16x24xf32>
    tpu.vector_store %arg10[%c0_43, %c0_44], %72 {strides = array<i32>} : memref<16x24xf32, #tpu.memory_space<vmem>>, vector<16x24xf32>,
    return
  }
  func.func @transform_0(%arg0: i32) -> (i32, i32) {
    %c0_i32 = arith.constant 0 : i32
    %c0_i32_0 = arith.constant 0 : i32
    return %arg0, %c0_i32 : i32, i32
  }
  func.func @transform_1(%arg0: i32) -> (i32, i32) {
    %c0_i32 = arith.constant 0 : i32
    %c0_i32_0 = arith.constant 0 : i32
    %c0_i32_1 = arith.constant 0 : i32
    return %c0_i32, %c0_i32_0 : i32, i32
  }
  func.func @transform_2(%arg0: i32) -> (i32, i32) {
    %c0_i32 = arith.constant 0 : i32
    %c0_i32_0 = arith.constant 0 : i32
    %c0_i32_1 = arith.constant 0 : i32
    return %c0_i32, %c0_i32_0 : i32, i32
  }
  func.func @transform_3(%arg0: i32) -> (i32, i32, i32) {
    %c0_i32 = arith.constant 0 : i32
    %c0_i32_0 = arith.constant 0 : i32
    %c0_i32_1 = arith.constant 0 : i32
    %c0_i32_2 = arith.constant 0 : i32
    return %c0_i32, %c0_i32_0, %c0_i32_1 : i32, i32, i32
  }
  func.func @transform_4(%arg0: i32) -> (i32, i32, i32) {
    %c0_i32 = arith.constant 0 : i32
    %c0_i32_0 = arith.constant 0 : i32
    %c0_i32_1 = arith.constant 0 : i32
    %c0_i32_2 = arith.constant 0 : i32
    return %c0_i32, %c0_i32_0, %c0_i32_1 : i32, i32, i32
  }
  func.func @transform_5(%arg0: i32) -> (i32, i32) {
    %c0_i32 = arith.constant 0 : i32
    %c0_i32_0 = arith.constant 0 : i32
    %c0_i32_1 = arith.constant 0 : i32
    return %c0_i32, %c0_i32_0 : i32, i32
  }
  func.func @transform_6(%arg0: i32) -> (i32, i32) {
    %c0_i32 = arith.constant 0 : i32
    %c0_i32_0 = arith.constant 0 : i32
    %c0_i32_1 = arith.constant 0 : i32
    return %c0_i32, %c0_i32_0 : i32, i32
  }
  func.func @transform_7(%arg0: i32) -> (i32, i32) {
    %c0_i32 = arith.constant 0 : i32
    %c0_i32_0 = arith.constant 0 : i32
    %c0_i32_1 = arith.constant 0 : i32
    return %c0_i32, %c0_i32_0 : i32, i32
  }
  func.func @transform_8(%arg0: i32) -> (i32, i32) {
    %c0_i32 = arith.constant 0 : i32
    %c0_i32_0 = arith.constant 0 : i32
    %c0_i32_1 = arith.constant 0 : i32
    return %c0_i32, %c0_i32_0 : i32, i32
  }
  func.func @transform_9(%arg0: i32) -> (i32, i32) {
    %c0_i32 = arith.constant 0 : i32
    %c0_i32_0 = arith.constant 0 : i32
    return %arg0, %c0_i32 : i32, i32
  }
}

</mosaic_0001>

<llo_original>
// kernel: tpu_custom_call.1
$region0: #{tpu_custom_call.1}
  #allocation0 [shape = 'u32[]', space=smem, size = 0x4, offset = 0x4, fixed_abs, tag = 'smem constant byte address 0x4 - core index']
  #allocation1 [shape = 'u32[144,128]{1,0:T(1,128)}', space=vmem, size = 0x12000, scoped, tag = 'internal scratch']
  %s0 = inlined_call_operand.vmem [shape: f32[16,24], index: 0, kind: input, shape index: {}]
  %s1 = inlined_call_operand.hbm [shape: f32[16,32], index: 1, kind: input, shape index: {}]
  %s2 = inlined_call_operand.vmem [shape: f32[1,32], index: 2, kind: input, shape index: {}]
  %s3 = inlined_call_operand.hbm [shape: f32[2,32,32], index: 3, kind: input, shape index: {}]
  %s4 = inlined_call_operand.vmem [shape: f32[2,1,32], index: 4, kind: input, shape index: {}]
  %s5 = inlined_call_operand.vmem [shape: f32[32,32], index: 5, kind: input, shape index: {}]
  %s6 = inlined_call_operand.vmem [shape: f32[1,32], index: 6, kind: input, shape index: {}]
  %s7 = inlined_call_operand.vmem [shape: f32[32,24], index: 7, kind: input, shape index: {}]
  %s8 = inlined_call_operand.vmem [shape: f32[1,24], index: 8, kind: input, shape index: {}]
  %s9 = inlined_call_operand.hbm [shape: f32[16,24], index: 9, kind: output, shape index: {}]
  %s10 = sld [smem:[#allocation0]]
  $region54: #{tpu_custom_call.1} parent=0
    _
  %s12 = ssub.s32 1, %s10
  %s13 = scalar_select 0, %s12, %s10
  $region1: #{tpu_custom_call.1} parent=0
    #allocation2 [shape = 'u8[8192]{0}', space=vmem, size = 0x2000, scoped, tag = 'input window, operand 1, single buffered']
    #allocation3 [shape = 's32[1]{0}', space=sflag, size = 0x4, scoped, tag = 'scoped memory for tpu_custom_call.1']
    #allocation4 [shape = 's32[1]{0}', space=sflag, size = 0x4, scoped, tag = 'scoped memory for tpu_custom_call.1']
    #allocation5 [shape = 'u8[32768]{0}', space=vmem, size = 0x8000, scoped, tag = 'input window, operand 3, single buffered']
    #allocation6 [shape = 's32[1]{0}', space=sflag, size = 0x4, scoped, tag = 'scoped memory for tpu_custom_call.1']
    #allocation7 [shape = 'u8[8192]{0}', space=vmem, size = 0x2000, scoped, tag = 'output window, operand 0, single buffered']
    %14 = vsyncpa [#allocation3], 0
    %15 = vsyncpa [#allocation6], 0
    %16 = vsyncpa [#allocation4], 0
    // Predicated region
    $region2: #{tpu_custom_call.1} parent=1 // pred_check
      _
    $region3: #{tpu_custom_call.1} parent=1 // pred_check_branch
      %18 = sbr.rel (0) target = $region5
    $region4: #{tpu_custom_call.1} parent=1 // pred_region
      _
    $region5: #{tpu_custom_call.1} parent=1 // pred_fallthru
      _
    // Predicated region
    $region6: #{tpu_custom_call.1} parent=1 // pred_check
      _
    $region7: #{tpu_custom_call.1} parent=1 // pred_check_branch
      %20 = sbr.rel (0) target = $region9
    $region8: #{tpu_custom_call.1} parent=1 // pred_region
      %s22 = ssub.s32 256, 256
      %23 = vsyncadd [#allocation3], %s22
      %s24 = sshll.u32 [#allocation2], 4
      %s25 = int_to_ptr.vmem [resolvable:$true] %s24
      %30 = dma.hbm_to_vmem [thread:$0]  %s1, 256, %s25, [#allocation3], 128, 128, 8
    $region9: #{tpu_custom_call.1} parent=1 // pred_fallthru
      _
    // Predicated region
    $region10: #{tpu_custom_call.1} parent=1 // pred_check
      _
    $region11: #{tpu_custom_call.1} parent=1 // pred_check_branch
      %32 = sbr.rel (0) target = $region13
    $region12: #{tpu_custom_call.1} parent=1 // pred_region
      _
    $region13: #{tpu_custom_call.1} parent=1 // pred_fallthru
      _
    // Predicated region
    $region14: #{tpu_custom_call.1} parent=1 // pred_check
      _
    $region15: #{tpu_custom_call.1} parent=1 // pred_check_branch
      %34 = sbr.rel (0) target = $region17
    $region16: #{tpu_custom_call.1} parent=1 // pred_region
      %s36 = ssub.s32 1024, 1024
      %37 = vsyncadd [#allocation6], %s36
      %s38 = sshll.u32 [#allocation5], 4
      %s39 = int_to_ptr.vmem [resolvable:$true] %s38
      %44 = dma.hbm_to_vmem [thread:$0]  %s3, 1024, %s39, [#allocation6], 128, 128, 8
    $region17: #{tpu_custom_call.1} parent=1 // pred_fallthru
      _
    // Predicated region
    $region18: #{tpu_custom_call.1} parent=1 // pred_check
      _
    $region19: #{tpu_custom_call.1} parent=1 // pred_check_branch
      %46 = sbr.rel (0) target = $region21
    $region20: #{tpu_custom_call.1} parent=1 // pred_region
      _
    $region21: #{tpu_custom_call.1} parent=1 // pred_fallthru
      _
    // Predicated region
    $region22: #{tpu_custom_call.1} parent=1 // pred_check
      _
    $region23: #{tpu_custom_call.1} parent=1 // pred_check_branch
      %48 = sbr.rel (0) target = $region25
    $region24: #{tpu_custom_call.1} parent=1 // pred_region
      _
    $region25: #{tpu_custom_call.1} parent=1 // pred_fallthru
      _
    // Predicated region
    $region26: #{tpu_custom_call.1} parent=1 // pred_check
      _
    $region27: #{tpu_custom_call.1} parent=1 // pred_check_branch
      %50 = sbr.rel (0) target = $region29
    $region28: #{tpu_custom_call.1} parent=1 // pred_region
      _
    $region29: #{tpu_custom_call.1} parent=1 // pred_fallthru
      _
    // Predicated region
    $region30: #{tpu_custom_call.1} parent=1 // pred_check
      _
    $region31: #{tpu_custom_call.1} parent=1 // pred_check_branch
      %52 = sbr.rel (0) target = $region33
    $region32: #{tpu_custom_call.1} parent=1 // pred_region
      _
    $region33: #{tpu_custom_call.1} parent=1 // pred_fallthru
      _
    // Predicated region
    $region34: #{tpu_custom_call.1} parent=1 // pred_check
      _
    $region35: #{tpu_custom_call.1} parent=1 // pred_check_branch
      %54 = sbr.rel (0) target = $region37
    $region36: #{tpu_custom_call.1} parent=1 // pred_region
      _
    $region37: #{tpu_custom_call.1} parent=1 // pred_fallthru
      _
    // Predicated region
    $region38: #{tpu_custom_call.1} parent=1 // pred_check
      _
    $region39: #{tpu_custom_call.1} parent=1 // pred_check_branch
      %56 = sbr.rel (0) target = $region41
    $region40: #{tpu_custom_call.1} parent=1 // pred_region
      %57 = dma.done [#allocation3], 256
    $region41: #{tpu_custom_call.1} parent=1 // pred_fallthru
      _
    // Predicated region
    $region42: #{tpu_custom_call.1} parent=1 // pred_check
      _
    $region43: #{tpu_custom_call.1} parent=1 // pred_check_branch
      %59 = sbr.rel (0) target = $region45
    $region44: #{tpu_custom_call.1} parent=1 // pred_region
      %60 = dma.done [#allocation6], 1024
    $region45: #{tpu_custom_call.1} parent=1 // pred_fallthru
      _
    %v61 = vld [vmem:[%s0] sm:$0xff]
    %v62 = vld [vmem:[%s0 + $0x8] sm:$0xff]
    %v63 = vld [vmem:[#allocation2] sm:$0xff]
    %v64 = vld [vmem:[#allocation2 + $0x8] sm:$0xff]
    %v65 = vld [vmem:[%s5] sm:$0xff]
    %v66 = vld [vmem:[%s5 + $0x8] sm:$0xff]
    %v67 = vld [vmem:[%s5 + $0x10] sm:$0xff]
    %v68 = vld [vmem:[%s5 + $0x18] sm:$0xff]
    %v69 = vld [vmem:[%s7] sm:$0xff]
    %v70 = vld [vmem:[%s7 + $0x8] sm:$0xff]
    %v71 = vld [vmem:[%s7 + $0x10] sm:$0xff]
    %v72 = vld [vmem:[%s7 + $0x18] sm:$0xff]
    %v73 = vld [vmem:[#allocation5] sm:$0xff]
    %v74 = vld [vmem:[#allocation5 + $0x8] sm:$0xff]
    %v75 = vld [vmem:[#allocation5 + $0x10] sm:$0xff]
    %v76 = vld [vmem:[#allocation5 + $0x18] sm:$0xff]
    %s77 = scalar_lea.vmem [#allocation5], 32
    %v78 = vld [vmem:[%s77] sm:$0xff]
    %v79 = vld [vmem:[%s77 + $0x8] sm:$0xff]
    %v80 = vld [vmem:[%s77 + $0x10] sm:$0xff]
    %v81 = vld [vmem:[%s77 + $0x18] sm:$0xff]
    %v82 = vld [vmem:[%s2] sm:$0x1]
    %v84 = vlaneseq
    %v85 = vshrl.u32 %v84, 7
    %v86 = vsub.s32 0, %v85
    %v87 = vrot.slane %v82, %v86
    %v89 = vld [vmem:[%s6] sm:$0x1]
    %v91 = vlaneseq
    %v92 = vshrl.u32 %v91, 7
    %v93 = vsub.s32 0, %v92
    %v94 = vrot.slane %v89, %v93
    %v96 = vld [vmem:[%s4] sm:$0x1]
    %v98 = vlaneseq
    %v99 = vshrl.u32 %v98, 7
    %v100 = vsub.s32 0, %v99
    %v101 = vrot.slane %v96, %v100
    %s103 = scalar_lea.vmem %s4, 1
    %v104 = vld [vmem:[%s103] sm:$0x1]
    %v106 = vlaneseq
    %v107 = vshrl.u32 %v106, 7
    %v108 = vsub.s32 0, %v107
    %v109 = vrot.slane %v104, %v108
    %v111 = vld [vmem:[%s8] sm:$0x1]
    %v113 = vlaneseq
    %v114 = vshrl.u32 %v113, 7
    %v115 = vsub.s32 0, %v114
    %v116 = vrot.slane %v111, %v115
    %vm118 = vcmask 130048
    %v120 = vsel %vm118, %v61, 0
    %v123 = vsel %vm118, %v62, 0
    %125 = vmatprep.subr.mxu0 0.0
    %126 = vmatpush1.msra.mxu0 0.0
    %127 = vmatprep.subr.mxu0 0.0
    %128 = vmatpush1.msra.mxu0 0.0
    %129 = vmatprep.subr.mxu0 0.0
    %130 = vmatpush1.msra.mxu0 0.0
    %131 = vmatprep.subr.mxu0 0.0
    %132 = vmatpush1.msra.mxu0 0.0
    %133 = vmatprep.subr.mxu0 0.0
    %134 = vmatpush1.msra.mxu0 0.0
    %135 = vmatprep.subr.mxu0 0.0
    %136 = vmatpush1.msra.mxu0 0.0
    %137 = vmatprep.subr.mxu0 0.0
    %138 = vmatpush1.msra.mxu0 0.0
    %139 = vmatprep.subr.mxu0 0.0
    %140 = vmatpush1.msra.mxu0 0.0
    %141 = vmatprep.subr.mxu0 0.0
    %142 = vmatpush1.msra.mxu0 0.0
    %143 = vmatprep.subr.mxu0 0.0
    %144 = vmatpush1.msra.mxu0 0.0
    %145 = vmatprep.subr.mxu0 0.0
    %146 = vmatpush1.msra.mxu0 0.0
    %147 = vmatprep.subr.mxu0 0.0
    %148 = vmatpush1.msra.mxu0 0.0
    %149 = vmatprep.subr.mxu0 0.0
    %150 = vmatpush1.msra.mxu0 0.0
    %151 = vmatprep.subr.mxu0 0.0
    %152 = vmatpush1.msra.mxu0 0.0
    %153 = vmatprep.subr.mxu0 0.0
    %154 = vmatpush1.msra.mxu0 %v64
    %155 = vmatprep.subr.mxu0 0.0
    %156 = vmatpush1.msra.mxu0 %v63
    %157 = vmatprep.subr.mxu0 0.0
    %158 = vmatpush2.msra.mxu0 0.0
    %159 = vmatprep.subr.mxu0 0.0
    %160 = vmatpush2.msra.mxu0 0.0
    %161 = vmatprep.subr.mxu0 0.0
    %162 = vmatpush2.msra.mxu0 0.0
    %163 = vmatprep.subr.mxu0 0.0
    %164 = vmatpush2.msra.mxu0 0.0
    %165 = vmatprep.subr.mxu0 0.0
    %166 = vmatpush2.msra.mxu0 0.0
    %167 = vmatprep.subr.mxu0 0.0
    %168 = vmatpush2.msra.mxu0 0.0
    %169 = vmatprep.subr.mxu0 0.0
    %170 = vmatpush2.msra.mxu0 0.0
    %171 = vmatprep.subr.mxu0 0.0
    %172 = vmatpush2.msra.mxu0 0.0
    %173 = vmatprep.subr.mxu0 0.0
    %174 = vmatpush2.msra.mxu0 0.0
    %175 = vmatprep.subr.mxu0 0.0
    %176 = vmatpush2.msra.mxu0 0.0
    %177 = vmatprep.subr.mxu0 0.0
    %178 = vmatpush2.msra.mxu0 0.0
    %179 = vmatprep.subr.mxu0 0.0
    %180 = vmatpush2.msra.mxu0 0.0
    %181 = vmatprep.subr.mxu0 0.0
    %182 = vmatpush2.msra.mxu0 0.0
    %183 = vmatprep.subr.mxu0 0.0
    %184 = vmatpush2.msra.mxu0 0.0
    %185 = vmatprep.subr.mxu0 0.0
    %186 = vmatpush2.msra.mxu0 0.0
    %187 = vmatprep.subr.mxu0 0.0
    %188 = vmatpush2.msra.mxu0 0.0
    %189 = vmatprep.mubr.f32.mxu0 0.0
    %190 = vmatmul.mubr.f32.gmra.mxu0 %v120
    %v191 = vpop.f32.mrf.mxu0
    %v192 = vadd.f32 0.0, %v191
    %v193 = vpop.f32.mrf.mxu0
    %194 = vmatprep.mubr.f32.mxu0 0.0
    %195 = vmatmul.mubr.f32.gmra.mxu0 %v123
    %v196 = vpop.f32.mrf.mxu0
    %v197 = vadd.f32 0.0, %v196
    %v198 = vpop.f32.mrf.mxu0
    %199 = vdwg.mxu0
    %v200 = vadd.f32 %v192, %v87
    %v201 = vadd.f32 %v197, %v87
    %v202 = vmax.f32 %v200, 0.0
    %v203 = vmax.f32 %v201, 0.0
    %vm204 = vcmask 261120
    %v206 = vsel %vm204, %v202, 0
    %v209 = vsel %vm204, %v203, 0
    %211 = vmatprep.subr.mxu0 0.0
    %212 = vmatpush1.msra.mxu0 0.0
    %213 = vmatprep.subr.mxu0 0.0
    %214 = vmatpush1.msra.mxu0 0.0
    %215 = vmatprep.subr.mxu0 0.0
    %216 = vmatpush1.msra.mxu0 0.0
    %217 = vmatprep.subr.mxu0 0.0
    %218 = vmatpush1.msra.mxu0 0.0
    %219 = vmatprep.subr.mxu0 0.0
    %220 = vmatpush1.msra.mxu0 0.0
    %221 = vmatprep.subr.mxu0 0.0
    %222 = vmatpush1.msra.mxu0 0.0
    %223 = vmatprep.subr.mxu0 0.0
    %224 = vmatpush1.msra.mxu0 0.0
    %225 = vmatprep.subr.mxu0 0.0
    %226 = vmatpush1.msra.mxu0 0.0
    %227 = vmatprep.subr.mxu0 0.0
    %228 = vmatpush1.msra.mxu0 0.0
    %229 = vmatprep.subr.mxu0 0.0
    %230 = vmatpush1.msra.mxu0 0.0
    %231 = vmatprep.subr.mxu0 0.0
    %232 = vmatpush1.msra.mxu0 0.0
    %233 = vmatprep.subr.mxu0 0.0
    %234 = vmatpush1.msra.mxu0 0.0
    %235 = vmatprep.subr.mxu0 0.0
    %236 = vmatpush1.msra.mxu0 %v76
    %237 = vmatprep.subr.mxu0 0.0
    %238 = vmatpush1.msra.mxu0 %v75
    %239 = vmatprep.subr.mxu0 0.0
    %240 = vmatpush1.msra.mxu0 %v74
    %241 = vmatprep.subr.mxu0 0.0
    %242 = vmatpush1.msra.mxu0 %v73
    %243 = vmatprep.subr.mxu0 0.0
    %244 = vmatpush2.msra.mxu0 0.0
    %245 = vmatprep.subr.mxu0 0.0
    %246 = vmatpush2.msra.mxu0 0.0
    %247 = vmatprep.subr.mxu0 0.0
    %248 = vmatpush2.msra.mxu0 0.0
    %249 = vmatprep.subr.mxu0 0.0
    %250 = vmatpush2.msra.mxu0 0.0
    %251 = vmatprep.subr.mxu0 0.0
    %252 = vmatpush2.msra.mxu0 0.0
    %253 = vmatprep.subr.mxu0 0.0
    %254 = vmatpush2.msra.mxu0 0.0
    %255 = vmatprep.subr.mxu0 0.0
    %256 = vmatpush2.msra.mxu0 0.0
    %257 = vmatprep.subr.mxu0 0.0
    %258 = vmatpush2.msra.mxu0 0.0
    %259 = vmatprep.subr.mxu0 0.0
    %260 = vmatpush2.msra.mxu0 0.0
    %261 = vmatprep.subr.mxu0 0.0
    %262 = vmatpush2.msra.mxu0 0.0
    %263 = vmatprep.subr.mxu0 0.0
    %264 = vmatpush2.msra.mxu0 0.0
    %265 = vmatprep.subr.mxu0 0.0
    %266 = vmatpush2.msra.mxu0 0.0
    %267 = vmatprep.subr.mxu0 0.0
    %268 = vmatpush2.msra.mxu0 0.0
    %269 = vmatprep.subr.mxu0 0.0
    %270 = vmatpush2.msra.mxu0 0.0
    %271 = vmatprep.subr.mxu0 0.0
    %272 = vmatpush2.msra.mxu0 0.0
    %273 = vmatprep.subr.mxu0 0.0
    %274 = vmatpush2.msra.mxu0 0.0
    %275 = vmatprep.mubr.f32.mxu0 0.0
    %276 = vmatmul.mubr.f32.gmra.mxu0 %v206
    %v277 = vpop.f32.mrf.mxu0
    %v278 = vadd.f32 %v101, %v277
    %v279 = vpop.f32.mrf.mxu0
    %280 = vmatprep.mubr.f32.mxu0 0.0
    %281 = vmatmul.mubr.f32.gmra.mxu0 %v209
    %v282 = vpop.f32.mrf.mxu0
    %v283 = vadd.f32 %v101, %v282
    %v284 = vpop.f32.mrf.mxu0
    %285 = vdwg.mxu0
    %v286 = vmax.f32 %v278, 0.0
    %v287 = vmax.f32 %v283, 0.0
    %v289 = vsel %vm204, %v286, 0
    %v292 = vsel %vm204, %v287, 0
    %294 = vmatprep.subr.mxu0 0.0
    %295 = vmatpush1.msra.mxu0 0.0
    %296 = vmatprep.subr.mxu0 0.0
    %297 = vmatpush1.msra.mxu0 0.0
    %298 = vmatprep.subr.mxu0 0.0
    %299 = vmatpush1.msra.mxu0 0.0
    %300 = vmatprep.subr.mxu0 0.0
    %301 = vmatpush1.msra.mxu0 0.0
    %302 = vmatprep.subr.mxu0 0.0
    %303 = vmatpush1.msra.mxu0 0.0
    %304 = vmatprep.subr.mxu0 0.0
    %305 = vmatpush1.msra.mxu0 0.0
    %306 = vmatprep.subr.mxu0 0.0
    %307 = vmatpush1.msra.mxu0 0.0
    %308 = vmatprep.subr.mxu0 0.0
    %309 = vmatpush1.msra.mxu0 0.0
    %310 = vmatprep.subr.mxu0 0.0
    %311 = vmatpush1.msra.mxu0 0.0
    %312 = vmatprep.subr.mxu0 0.0
    %313 = vmatpush1.msra.mxu0 0.0
    %314 = vmatprep.subr.mxu0 0.0
    %315 = vmatpush1.msra.mxu0 0.0
    %316 = vmatprep.subr.mxu0 0.0
    %317 = vmatpush1.msra.mxu0 0.0
    %318 = vmatprep.subr.mxu0 0.0
    %319 = vmatpush1.msra.mxu0 %v81
    %320 = vmatprep.subr.mxu0 0.0
    %321 = vmatpush1.msra.mxu0 %v80
    %322 = vmatprep.subr.mxu0 0.0
    %323 = vmatpush1.msra.mxu0 %v79
    %324 = vmatprep.subr.mxu0 0.0
    %325 = vmatpush1.msra.mxu0 %v78
    %326 = vmatprep.subr.mxu0 0.0
    %327 = vmatpush2.msra.mxu0 0.0
    %328 = vmatprep.subr.mxu0 0.0
    %329 = vmatpush2.msra.mxu0 0.0
    %330 = vmatprep.subr.mxu0 0.0
    %331 = vmatpush2.msra.mxu0 0.0
    %332 = vmatprep.subr.mxu0 0.0
    %333 = vmatpush2.msra.mxu0 0.0
    %334 = vmatprep.subr.mxu0 0.0
    %335 = vmatpush2.msra.mxu0 0.0
    %336 = vmatprep.subr.mxu0 0.0
    %337 = vmatpush2.msra.mxu0 0.0
    %338 = vmatprep.subr.mxu0 0.0
    %339 = vmatpush2.msra.mxu0 0.0
    %340 = vmatprep.subr.mxu0 0.0
    %341 = vmatpush2.msra.mxu0 0.0
    %342 = vmatprep.subr.mxu0 0.0
    %343 = vmatpush2.msra.mxu0 0.0
    %344 = vmatprep.subr.mxu0 0.0
    %345 = vmatpush2.msra.mxu0 0.0
    %346 = vmatprep.subr.mxu0 0.0
    %347 = vmatpush2.msra.mxu0 0.0
    %348 = vmatprep.subr.mxu0 0.0
    %349 = vmatpush2.msra.mxu0 0.0
    %350 = vmatprep.subr.mxu0 0.0
    %351 = vmatpush2.msra.mxu0 0.0
    %352 = vmatprep.subr.mxu0 0.0
    %353 = vmatpush2.msra.mxu0 0.0
    %354 = vmatprep.subr.mxu0 0.0
    %355 = vmatpush2.msra.mxu0 0.0
    %356 = vmatprep.subr.mxu0 0.0
    %357 = vmatpush2.msra.mxu0 0.0
    %358 = vmatprep.mubr.f32.mxu0 0.0
    %359 = vmatmul.mubr.f32.gmra.mxu0 %v289
    %v360 = vpop.f32.mrf.mxu0
    %v361 = vadd.f32 %v109, %v360
    %v362 = vpop.f32.mrf.mxu0
    %363 = vmatprep.mubr.f32.mxu0 0.0
    %364 = vmatmul.mubr.f32.gmra.mxu0 %v292
    %v365 = vpop.f32.mrf.mxu0
    %v366 = vadd.f32 %v109, %v365
    %v367 = vpop.f32.mrf.mxu0
    %368 = vdwg.mxu0
    %v369 = vmax.f32 %v361, 0.0
    %v370 = vmax.f32 %v366, 0.0
    %v371 = vadd.f32 %v369, 0.0
    %v372 = vadd.f32 %v370, 0.0
    %v374 = vsel %vm204, %v369, 0
    %v377 = vsel %vm204, %v370, 0
    %379 = vmatprep.subr.mxu0 0.0
    %380 = vmatpush1.msra.mxu0 0.0
    %381 = vmatprep.subr.mxu0 0.0
    %382 = vmatpush1.msra.mxu0 0.0
    %383 = vmatprep.subr.mxu0 0.0
    %384 = vmatpush1.msra.mxu0 0.0
    %385 = vmatprep.subr.mxu0 0.0
    %386 = vmatpush1.msra.mxu0 0.0
    %387 = vmatprep.subr.mxu0 0.0
    %388 = vmatpush1.msra.mxu0 0.0
    %389 = vmatprep.subr.mxu0 0.0
    %390 = vmatpush1.msra.mxu0 0.0
    %391 = vmatprep.subr.mxu0 0.0
    %392 = vmatpush1.msra.mxu0 0.0
    %393 = vmatprep.subr.mxu0 0.0
    %394 = vmatpush1.msra.mxu0 0.0
    %395 = vmatprep.subr.mxu0 0.0
    %396 = vmatpush1.msra.mxu0 0.0
    %397 = vmatprep.subr.mxu0 0.0
    %398 = vmatpush1.msra.mxu0 0.0
    %399 = vmatprep.subr.mxu0 0.0
    %400 = vmatpush1.msra.mxu0 0.0
    %401 = vmatprep.subr.mxu0 0.0
    %402 = vmatpush1.msra.mxu0 0.0
    %403 = vmatprep.subr.mxu0 0.0
    %404 = vmatpush1.msra.mxu0 %v68
    %405 = vmatprep.subr.mxu0 0.0
    %406 = vmatpush1.msra.mxu0 %v67
    %407 = vmatprep.subr.mxu0 0.0
    %408 = vmatpush1.msra.mxu0 %v66
    %409 = vmatprep.subr.mxu0 0.0
    %410 = vmatpush1.msra.mxu0 %v65
    %411 = vmatprep.subr.mxu0 0.0
    %412 = vmatpush2.msra.mxu0 0.0
    %413 = vmatprep.subr.mxu0 0.0
    %414 = vmatpush2.msra.mxu0 0.0
    %415 = vmatprep.subr.mxu0 0.0
    %416 = vmatpush2.msra.mxu0 0.0
    %417 = vmatprep.subr.mxu0 0.0
    %418 = vmatpush2.msra.mxu0 0.0
    %419 = vmatprep.subr.mxu0 0.0
    %420 = vmatpush2.msra.mxu0 0.0
    %421 = vmatprep.subr.mxu0 0.0
    %422 = vmatpush2.msra.mxu0 0.0
    %423 = vmatprep.subr.mxu0 0.0
    %424 = vmatpush2.msra.mxu0 0.0
    %425 = vmatprep.subr.mxu0 0.0
    %426 = vmatpush2.msra.mxu0 0.0
    %427 = vmatprep.subr.mxu0 0.0
    %428 = vmatpush2.msra.mxu0 0.0
    %429 = vmatprep.subr.mxu0 0.0
    %430 = vmatpush2.msra.mxu0 0.0
    %431 = vmatprep.subr.mxu0 0.0
    %432 = vmatpush2.msra.mxu0 0.0
    %433 = vmatprep.subr.mxu0 0.0
    %434 = vmatpush2.msra.mxu0 0.0
    %435 = vmatprep.subr.mxu0 0.0
    %436 = vmatpush2.msra.mxu0 0.0
    %437 = vmatprep.subr.mxu0 0.0
    %438 = vmatpush2.msra.mxu0 0.0
    %439 = vmatprep.subr.mxu0 0.0
    %440 = vmatpush2.msra.mxu0 0.0
    %441 = vmatprep.subr.mxu0 0.0
    %442 = vmatpush2.msra.mxu0 0.0
    %443 = vmatprep.mubr.f32.mxu0 0.0
    %444 = vmatmul.mubr.f32.gmra.mxu0 %v374
    %v445 = vpop.f32.mrf.mxu0
    %v446 = vadd.f32 %v94, %v445
    %v447 = vpop.f32.mrf.mxu0
    %448 = vmatprep.mubr.f32.mxu0 0.0
    %449 = vmatmul.mubr.f32.gmra.mxu0 %v377
    %v450 = vpop.f32.mrf.mxu0
    %v451 = vadd.f32 %v94, %v450
    %v452 = vpop.f32.mrf.mxu0
    %453 = vdwg.mxu0
    %v454 = vsub.f32 %v192, %v446
    %v455 = vsub.f32 %v197, %v451
    %v456 = vadd.f32 %v454, %v87
    %v457 = vadd.f32 %v455, %v87
    %v458 = vmax.f32 %v456, 0.0
    %v459 = vmax.f32 %v457, 0.0
    %v461 = vsel %vm204, %v458, 0
    %v464 = vsel %vm204, %v459, 0
    %466 = vmatprep.subr.mxu0 0.0
    %467 = vmatpush1.msra.mxu0 0.0
    %468 = vmatprep.subr.mxu0 0.0
    %469 = vmatpush1.msra.mxu0 0.0
    %470 = vmatprep.subr.mxu0 0.0
    %471 = vmatpush1.msra.mxu0 0.0
    %472 = vmatprep.subr.mxu0 0.0
    %473 = vmatpush1.msra.mxu0 0.0
    %474 = vmatprep.subr.mxu0 0.0
    %475 = vmatpush1.msra.mxu0 0.0
    %476 = vmatprep.subr.mxu0 0.0
    %477 = vmatpush1.msra.mxu0 0.0
    %478 = vmatprep.subr.mxu0 0.0
    %479 = vmatpush1.msra.mxu0 0.0
    %480 = vmatprep.subr.mxu0 0.0
    %481 = vmatpush1.msra.mxu0 0.0
    %482 = vmatprep.subr.mxu0 0.0
    %483 = vmatpush1.msra.mxu0 0.0
    %484 = vmatprep.subr.mxu0 0.0
    %485 = vmatpush1.msra.mxu0 0.0
    %486 = vmatprep.subr.mxu0 0.0
    %487 = vmatpush1.msra.mxu0 0.0
    %488 = vmatprep.subr.mxu0 0.0
    %489 = vmatpush1.msra.mxu0 0.0
    %490 = vmatprep.subr.mxu0 0.0
    %491 = vmatpush1.msra.mxu0 %v76
    %492 = vmatprep.subr.mxu0 0.0
    %493 = vmatpush1.msra.mxu0 %v75
    %494 = vmatprep.subr.mxu0 0.0
    %495 = vmatpush1.msra.mxu0 %v74
    %496 = vmatprep.subr.mxu0 0.0
    %497 = vmatpush1.msra.mxu0 %v73
    %498 = vmatprep.subr.mxu0 0.0
    %499 = vmatpush2.msra.mxu0 0.0
    %500 = vmatprep.subr.mxu0 0.0
    %501 = vmatpush2.msra.mxu0 0.0
    %502 = vmatprep.subr.mxu0 0.0
    %503 = vmatpush2.msra.mxu0 0.0
    %504 = vmatprep.subr.mxu0 0.0
    %505 = vmatpush2.msra.mxu0 0.0
    %506 = vmatprep.subr.mxu0 0.0
    %507 = vmatpush2.msra.mxu0 0.0
    %508 = vmatprep.subr.mxu0 0.0
    %509 = vmatpush2.msra.mxu0 0.0
    %510 = vmatprep.subr.mxu0 0.0
    %511 = vmatpush2.msra.mxu0 0.0
    %512 = vmatprep.subr.mxu0 0.0
    %513 = vmatpush2.msra.mxu0 0.0
    %514 = vmatprep.subr.mxu0 0.0
    %515 = vmatpush2.msra.mxu0 0.0
    %516 = vmatprep.subr.mxu0 0.0
    %517 = vmatpush2.msra.mxu0 0.0
    %518 = vmatprep.subr.mxu0 0.0
    %519 = vmatpush2.msra.mxu0 0.0
    %520 = vmatprep.subr.mxu0 0.0
    %521 = vmatpush2.msra.mxu0 0.0
    %522 = vmatprep.subr.mxu0 0.0
    %523 = vmatpush2.msra.mxu0 0.0
    %524 = vmatprep.subr.mxu0 0.0
    %525 = vmatpush2.msra.mxu0 0.0
    %526 = vmatprep.subr.mxu0 0.0
    %527 = vmatpush2.msra.mxu0 0.0
    %528 = vmatprep.subr.mxu0 0.0
    %529 = vmatpush2.msra.mxu0 0.0
    %530 = vmatprep.mubr.f32.mxu0 0.0
    %531 = vmatmul.mubr.f32.gmra.mxu0 %v461
    %v532 = vpop.f32.mrf.mxu0
    %v533 = vadd.f32 %v101, %v532
    %v534 = vpop.f32.mrf.mxu0
    %535 = vmatprep.mubr.f32.mxu0 0.0
    %536 = vmatmul.mubr.f32.gmra.mxu0 %v464
    %v537 = vpop.f32.mrf.mxu0
    %v538 = vadd.f32 %v101, %v537
    %v539 = vpop.f32.mrf.mxu0
    %540 = vdwg.mxu0
    %v541 = vmax.f32 %v533, 0.0
    %v542 = vmax.f32 %v538, 0.0
    %v544 = vsel %vm204, %v541, 0
    %v547 = vsel %vm204, %v542, 0
    %549 = vmatprep.subr.mxu0 0.0
    %550 = vmatpush1.msra.mxu0 0.0
    %551 = vmatprep.subr.mxu0 0.0
    %552 = vmatpush1.msra.mxu0 0.0
    %553 = vmatprep.subr.mxu0 0.0
    %554 = vmatpush1.msra.mxu0 0.0
    %555 = vmatprep.subr.mxu0 0.0
    %556 = vmatpush1.msra.mxu0 0.0
    %557 = vmatprep.subr.mxu0 0.0
    %558 = vmatpush1.msra.mxu0 0.0
    %559 = vmatprep.subr.mxu0 0.0
    %560 = vmatpush1.msra.mxu0 0.0
    %561 = vmatprep.subr.mxu0 0.0
    %562 = vmatpush1.msra.mxu0 0.0
    %563 = vmatprep.subr.mxu0 0.0
    %564 = vmatpush1.msra.mxu0 0.0
    %565 = vmatprep.subr.mxu0 0.0
    %566 = vmatpush1.msra.mxu0 0.0
    %567 = vmatprep.subr.mxu0 0.0
    %568 = vmatpush1.msra.mxu0 0.0
    %569 = vmatprep.subr.mxu0 0.0
    %570 = vmatpush1.msra.mxu0 0.0
    %571 = vmatprep.subr.mxu0 0.0
    %572 = vmatpush1.msra.mxu0 0.0
    %573 = vmatprep.subr.mxu0 0.0
    %574 = vmatpush1.msra.mxu0 %v81
    %575 = vmatprep.subr.mxu0 0.0
    %576 = vmatpush1.msra.mxu0 %v80
    %577 = vmatprep.subr.mxu0 0.0
    %578 = vmatpush1.msra.mxu0 %v79
    %579 = vmatprep.subr.mxu0 0.0
    %580 = vmatpush1.msra.mxu0 %v78
    %581 = vmatprep.subr.mxu0 0.0
    %582 = vmatpush2.msra.mxu0 0.0
    %583 = vmatprep.subr.mxu0 0.0
    %584 = vmatpush2.msra.mxu0 0.0
    %585 = vmatprep.subr.mxu0 0.0
    %586 = vmatpush2.msra.mxu0 0.0
    %587 = vmatprep.subr.mxu0 0.0
    %588 = vmatpush2.msra.mxu0 0.0
    %589 = vmatprep.subr.mxu0 0.0
    %590 = vmatpush2.msra.mxu0 0.0
    %591 = vmatprep.subr.mxu0 0.0
    %592 = vmatpush2.msra.mxu0 0.0
    %593 = vmatprep.subr.mxu0 0.0
    %594 = vmatpush2.msra.mxu0 0.0
    %595 = vmatprep.subr.mxu0 0.0
    %596 = vmatpush2.msra.mxu0 0.0
    %597 = vmatprep.subr.mxu0 0.0
    %598 = vmatpush2.msra.mxu0 0.0
    %599 = vmatprep.subr.mxu0 0.0
    %600 = vmatpush2.msra.mxu0 0.0
    %601 = vmatprep.subr.mxu0 0.0
    %602 = vmatpush2.msra.mxu0 0.0
    %603 = vmatprep.subr.mxu0 0.0
    %604 = vmatpush2.msra.mxu0 0.0
    %605 = vmatprep.subr.mxu0 0.0
    %606 = vmatpush2.msra.mxu0 0.0
    %607 = vmatprep.subr.mxu0 0.0
    %608 = vmatpush2.msra.mxu0 0.0
    %609 = vmatprep.subr.mxu0 0.0
    %610 = vmatpush2.msra.mxu0 0.0
    %611 = vmatprep.subr.mxu0 0.0
    %612 = vmatpush2.msra.mxu0 0.0
    %613 = vmatprep.mubr.f32.mxu0 0.0
    %614 = vmatmul.mubr.f32.gmra.mxu0 %v544
    %v615 = vpop.f32.mrf.mxu0
    %v616 = vadd.f32 %v109, %v615
    %v617 = vpop.f32.mrf.mxu0
    %618 = vmatprep.mubr.f32.mxu0 0.0
    %619 = vmatmul.mubr.f32.gmra.mxu0 %v547
    %v620 = vpop.f32.mrf.mxu0
    %v621 = vadd.f32 %v109, %v620
    %v622 = vpop.f32.mrf.mxu0
    %623 = vdwg.mxu0
    %v624 = vmax.f32 %v616, 0.0
    %v625 = vmax.f32 %v621, 0.0
    %v626 = vadd.f32 %v371, %v624
    %v627 = vadd.f32 %v372, %v625
    %v629 = vsel %vm204, %v624, 0
    %v632 = vsel %vm204, %v625, 0
    %634 = vmatprep.subr.mxu0 0.0
    %635 = vmatpush1.msra.mxu0 0.0
    %636 = vmatprep.subr.mxu0 0.0
    %637 = vmatpush1.msra.mxu0 0.0
    %638 = vmatprep.subr.mxu0 0.0
    %639 = vmatpush1.msra.mxu0 0.0
    %640 = vmatprep.subr.mxu0 0.0
    %641 = vmatpush1.msra.mxu0 0.0
    %642 = vmatprep.subr.mxu0 0.0
    %643 = vmatpush1.msra.mxu0 0.0
    %644 = vmatprep.subr.mxu0 0.0
    %645 = vmatpush1.msra.mxu0 0.0
    %646 = vmatprep.subr.mxu0 0.0
    %647 = vmatpush1.msra.mxu0 0.0
    %648 = vmatprep.subr.mxu0 0.0
    %649 = vmatpush1.msra.mxu0 0.0
    %650 = vmatprep.subr.mxu0 0.0
    %651 = vmatpush1.msra.mxu0 0.0
    %652 = vmatprep.subr.mxu0 0.0
    %653 = vmatpush1.msra.mxu0 0.0
    %654 = vmatprep.subr.mxu0 0.0
    %655 = vmatpush1.msra.mxu0 0.0
    %656 = vmatprep.subr.mxu0 0.0
    %657 = vmatpush1.msra.mxu0 0.0
    %658 = vmatprep.subr.mxu0 0.0
    %659 = vmatpush1.msra.mxu0 %v68
    %660 = vmatprep.subr.mxu0 0.0
    %661 = vmatpush1.msra.mxu0 %v67
    %662 = vmatprep.subr.mxu0 0.0
    %663 = vmatpush1.msra.mxu0 %v66
    %664 = vmatprep.subr.mxu0 0.0
    %665 = vmatpush1.msra.mxu0 %v65
    %666 = vmatprep.subr.mxu0 0.0
    %667 = vmatpush2.msra.mxu0 0.0
    %668 = vmatprep.subr.mxu0 0.0
    %669 = vmatpush2.msra.mxu0 0.0
    %670 = vmatprep.subr.mxu0 0.0
    %671 = vmatpush2.msra.mxu0 0.0
    %672 = vmatprep.subr.mxu0 0.0
    %673 = vmatpush2.msra.mxu0 0.0
    %674 = vmatprep.subr.mxu0 0.0
    %675 = vmatpush2.msra.mxu0 0.0
    %676 = vmatprep.subr.mxu0 0.0
    %677 = vmatpush2.msra.mxu0 0.0
    %678 = vmatprep.subr.mxu0 0.0
    %679 = vmatpush2.msra.mxu0 0.0
    %680 = vmatprep.subr.mxu0 0.0
    %681 = vmatpush2.msra.mxu0 0.0
    %682 = vmatprep.subr.mxu0 0.0
    %683 = vmatpush2.msra.mxu0 0.0
    %684 = vmatprep.subr.mxu0 0.0
    %685 = vmatpush2.msra.mxu0 0.0
    %686 = vmatprep.subr.mxu0 0.0
    %687 = vmatpush2.msra.mxu0 0.0
    %688 = vmatprep.subr.mxu0 0.0
    %689 = vmatpush2.msra.mxu0 0.0
    %690 = vmatprep.subr.mxu0 0.0
    %691 = vmatpush2.msra.mxu0 0.0
    %692 = vmatprep.subr.mxu0 0.0
    %693 = vmatpush2.msra.mxu0 0.0
    %694 = vmatprep.subr.mxu0 0.0
    %695 = vmatpush2.msra.mxu0 0.0
    %696 = vmatprep.subr.mxu0 0.0
    %697 = vmatpush2.msra.mxu0 0.0
    %698 = vmatprep.mubr.f32.mxu0 0.0
    %699 = vmatmul.mubr.f32.gmra.mxu0 %v629
    %v700 = vpop.f32.mrf.mxu0
    %v701 = vadd.f32 %v94, %v700
    %v702 = vpop.f32.mrf.mxu0
    %703 = vmatprep.mubr.f32.mxu0 0.0
    %704 = vmatmul.mubr.f32.gmra.mxu0 %v632
    %v705 = vpop.f32.mrf.mxu0
    %v706 = vadd.f32 %v94, %v705
    %v707 = vpop.f32.mrf.mxu0
    %708 = vdwg.mxu0
    %v709 = vsub.f32 %v454, %v701
    %v710 = vsub.f32 %v455, %v706
    %v711 = vadd.f32 %v709, %v87
    %v712 = vadd.f32 %v710, %v87
    %v713 = vmax.f32 %v711, 0.0
    %v714 = vmax.f32 %v712, 0.0
    %v716 = vsel %vm204, %v713, 0
    %v719 = vsel %vm204, %v714, 0
    %721 = vmatprep.subr.mxu0 0.0
    %722 = vmatpush1.msra.mxu0 0.0
    %723 = vmatprep.subr.mxu0 0.0
    %724 = vmatpush1.msra.mxu0 0.0
    %725 = vmatprep.subr.mxu0 0.0
    %726 = vmatpush1.msra.mxu0 0.0
    %727 = vmatprep.subr.mxu0 0.0
    %728 = vmatpush1.msra.mxu0 0.0
    %729 = vmatprep.subr.mxu0 0.0
    %730 = vmatpush1.msra.mxu0 0.0
    %731 = vmatprep.subr.mxu0 0.0
    %732 = vmatpush1.msra.mxu0 0.0
    %733 = vmatprep.subr.mxu0 0.0
    %734 = vmatpush1.msra.mxu0 0.0
    %735 = vmatprep.subr.mxu0 0.0
    %736 = vmatpush1.msra.mxu0 0.0
    %737 = vmatprep.subr.mxu0 0.0
    %738 = vmatpush1.msra.mxu0 0.0
    %739 = vmatprep.subr.mxu0 0.0
    %740 = vmatpush1.msra.mxu0 0.0
    %741 = vmatprep.subr.mxu0 0.0
    %742 = vmatpush1.msra.mxu0 0.0
    %743 = vmatprep.subr.mxu0 0.0
    %744 = vmatpush1.msra.mxu0 0.0
    %745 = vmatprep.subr.mxu0 0.0
    %746 = vmatpush1.msra.mxu0 %v76
    %747 = vmatprep.subr.mxu0 0.0
    %748 = vmatpush1.msra.mxu0 %v75
    %749 = vmatprep.subr.mxu0 0.0
    %750 = vmatpush1.msra.mxu0 %v74
    %751 = vmatprep.subr.mxu0 0.0
    %752 = vmatpush1.msra.mxu0 %v73
    %753 = vmatprep.subr.mxu0 0.0
    %754 = vmatpush2.msra.mxu0 0.0
    %755 = vmatprep.subr.mxu0 0.0
    %756 = vmatpush2.msra.mxu0 0.0
    %757 = vmatprep.subr.mxu0 0.0
    %758 = vmatpush2.msra.mxu0 0.0
    %759 = vmatprep.subr.mxu0 0.0
    %760 = vmatpush2.msra.mxu0 0.0
    %761 = vmatprep.subr.mxu0 0.0
    %762 = vmatpush2.msra.mxu0 0.0
    %763 = vmatprep.subr.mxu0 0.0
    %764 = vmatpush2.msra.mxu0 0.0
    %765 = vmatprep.subr.mxu0 0.0
    %766 = vmatpush2.msra.mxu0 0.0
    %767 = vmatprep.subr.mxu0 0.0
    %768 = vmatpush2.msra.mxu0 0.0
    %769 = vmatprep.subr.mxu0 0.0
    %770 = vmatpush2.msra.mxu0 0.0
    %771 = vmatprep.subr.mxu0 0.0
    %772 = vmatpush2.msra.mxu0 0.0
    %773 = vmatprep.subr.mxu0 0.0
    %774 = vmatpush2.msra.mxu0 0.0
    %775 = vmatprep.subr.mxu0 0.0
    %776 = vmatpush2.msra.mxu0 0.0
    %777 = vmatprep.subr.mxu0 0.0
    %778 = vmatpush2.msra.mxu0 0.0
    %779 = vmatprep.subr.mxu0 0.0
    %780 = vmatpush2.msra.mxu0 0.0
    %781 = vmatprep.subr.mxu0 0.0
    %782 = vmatpush2.msra.mxu0 0.0
    %783 = vmatprep.subr.mxu0 0.0
    %784 = vmatpush2.msra.mxu0 0.0
    %785 = vmatprep.mubr.f32.mxu0 0.0
    %786 = vmatmul.mubr.f32.gmra.mxu0 %v716
    %v787 = vpop.f32.mrf.mxu0
    %v788 = vadd.f32 %v101, %v787
    %v789 = vpop.f32.mrf.mxu0
    %790 = vmatprep.mubr.f32.mxu0 0.0
    %791 = vmatmul.mubr.f32.gmra.mxu0 %v719
    %v792 = vpop.f32.mrf.mxu0
    %v793 = vadd.f32 %v101, %v792
    %v794 = vpop.f32.mrf.mxu0
    %795 = vdwg.mxu0
    %v796 = vmax.f32 %v788, 0.0
    %v797 = vmax.f32 %v793, 0.0
    %v799 = vsel %vm204, %v796, 0
    %v802 = vsel %vm204, %v797, 0
    %804 = vmatprep.subr.mxu0 0.0
    %805 = vmatpush1.msra.mxu0 0.0
    %806 = vmatprep.subr.mxu0 0.0
    %807 = vmatpush1.msra.mxu0 0.0
    %808 = vmatprep.subr.mxu0 0.0
    %809 = vmatpush1.msra.mxu0 0.0
    %810 = vmatprep.subr.mxu0 0.0
    %811 = vmatpush1.msra.mxu0 0.0
    %812 = vmatprep.subr.mxu0 0.0
    %813 = vmatpush1.msra.mxu0 0.0
    %814 = vmatprep.subr.mxu0 0.0
    %815 = vmatpush1.msra.mxu0 0.0
    %816 = vmatprep.subr.mxu0 0.0
    %817 = vmatpush1.msra.mxu0 0.0
    %818 = vmatprep.subr.mxu0 0.0
    %819 = vmatpush1.msra.mxu0 0.0
    %820 = vmatprep.subr.mxu0 0.0
    %821 = vmatpush1.msra.mxu0 0.0
    %822 = vmatprep.subr.mxu0 0.0
    %823 = vmatpush1.msra.mxu0 0.0
    %824 = vmatprep.subr.mxu0 0.0
    %825 = vmatpush1.msra.mxu0 0.0
    %826 = vmatprep.subr.mxu0 0.0
    %827 = vmatpush1.msra.mxu0 0.0
    %828 = vmatprep.subr.mxu0 0.0
    %829 = vmatpush1.msra.mxu0 %v81
    %830 = vmatprep.subr.mxu0 0.0
    %831 = vmatpush1.msra.mxu0 %v80
    %832 = vmatprep.subr.mxu0 0.0
    %833 = vmatpush1.msra.mxu0 %v79
    %834 = vmatprep.subr.mxu0 0.0
    %835 = vmatpush1.msra.mxu0 %v78
    %836 = vmatprep.subr.mxu0 0.0
    %837 = vmatpush2.msra.mxu0 0.0
    %838 = vmatprep.subr.mxu0 0.0
    %839 = vmatpush2.msra.mxu0 0.0
    %840 = vmatprep.subr.mxu0 0.0
    %841 = vmatpush2.msra.mxu0 0.0
    %842 = vmatprep.subr.mxu0 0.0
    %843 = vmatpush2.msra.mxu0 0.0
    %844 = vmatprep.subr.mxu0 0.0
    %845 = vmatpush2.msra.mxu0 0.0
    %846 = vmatprep.subr.mxu0 0.0
    %847 = vmatpush2.msra.mxu0 0.0
    %848 = vmatprep.subr.mxu0 0.0
    %849 = vmatpush2.msra.mxu0 0.0
    %850 = vmatprep.subr.mxu0 0.0
    %851 = vmatpush2.msra.mxu0 0.0
    %852 = vmatprep.subr.mxu0 0.0
    %853 = vmatpush2.msra.mxu0 0.0
    %854 = vmatprep.subr.mxu0 0.0
    %855 = vmatpush2.msra.mxu0 0.0
    %856 = vmatprep.subr.mxu0 0.0
    %857 = vmatpush2.msra.mxu0 0.0
    %858 = vmatprep.subr.mxu0 0.0
    %859 = vmatpush2.msra.mxu0 0.0
    %860 = vmatprep.subr.mxu0 0.0
    %861 = vmatpush2.msra.mxu0 0.0
    %862 = vmatprep.subr.mxu0 0.0
    %863 = vmatpush2.msra.mxu0 0.0
    %864 = vmatprep.subr.mxu0 0.0
    %865 = vmatpush2.msra.mxu0 0.0
    %866 = vmatprep.subr.mxu0 0.0
    %867 = vmatpush2.msra.mxu0 0.0
    %868 = vmatprep.mubr.f32.mxu0 0.0
    %869 = vmatmul.mubr.f32.gmra.mxu0 %v799
    %v870 = vpop.f32.mrf.mxu0
    %v871 = vadd.f32 %v109, %v870
    %v872 = vpop.f32.mrf.mxu0
    %873 = vmatprep.mubr.f32.mxu0 0.0
    %874 = vmatmul.mubr.f32.gmra.mxu0 %v802
    %v875 = vpop.f32.mrf.mxu0
    %v876 = vadd.f32 %v109, %v875
    %v877 = vpop.f32.mrf.mxu0
    %878 = vdwg.mxu0
    %v879 = vmax.f32 %v871, 0.0
    %v880 = vmax.f32 %v876, 0.0
    %v881 = vadd.f32 %v626, %v879
    %v882 = vadd.f32 %v627, %v880
    %v884 = vsel %vm204, %v881, 0
    %v887 = vsel %vm204, %v882, 0
    %889 = vmatprep.subr.mxu0 0.0
    %890 = vmatpush1.msra.mxu0 0.0
    %891 = vmatprep.subr.mxu0 0.0
    %892 = vmatpush1.msra.mxu0 0.0
    %893 = vmatprep.subr.mxu0 0.0
    %894 = vmatpush1.msra.mxu0 0.0
    %895 = vmatprep.subr.mxu0 0.0
    %896 = vmatpush1.msra.mxu0 0.0
    %897 = vmatprep.subr.mxu0 0.0
    %898 = vmatpush1.msra.mxu0 0.0
    %899 = vmatprep.subr.mxu0 0.0
    %900 = vmatpush1.msra.mxu0 0.0
    %901 = vmatprep.subr.mxu0 0.0
    %902 = vmatpush1.msra.mxu0 0.0
    %903 = vmatprep.subr.mxu0 0.0
    %904 = vmatpush1.msra.mxu0 0.0
    %905 = vmatprep.subr.mxu0 0.0
    %906 = vmatpush1.msra.mxu0 0.0
    %907 = vmatprep.subr.mxu0 0.0
    %908 = vmatpush1.msra.mxu0 0.0
    %909 = vmatprep.subr.mxu0 0.0
    %910 = vmatpush1.msra.mxu0 0.0
    %911 = vmatprep.subr.mxu0 0.0
    %912 = vmatpush1.msra.mxu0 0.0
    %913 = vmatprep.subr.mxu0 0.0
    %914 = vmatpush1.msra.mxu0 %v72
    %915 = vmatprep.subr.mxu0 0.0
    %916 = vmatpush1.msra.mxu0 %v71
    %917 = vmatprep.subr.mxu0 0.0
    %918 = vmatpush1.msra.mxu0 %v70
    %919 = vmatprep.subr.mxu0 0.0
    %920 = vmatpush1.msra.mxu0 %v69
    %921 = vmatprep.subr.mxu0 0.0
    %922 = vmatpush2.msra.mxu0 0.0
    %923 = vmatprep.subr.mxu0 0.0
    %924 = vmatpush2.msra.mxu0 0.0
    %925 = vmatprep.subr.mxu0 0.0
    %926 = vmatpush2.msra.mxu0 0.0
    %927 = vmatprep.subr.mxu0 0.0
    %928 = vmatpush2.msra.mxu0 0.0
    %929 = vmatprep.subr.mxu0 0.0
    %930 = vmatpush2.msra.mxu0 0.0
    %931 = vmatprep.subr.mxu0 0.0
    %932 = vmatpush2.msra.mxu0 0.0
    %933 = vmatprep.subr.mxu0 0.0
    %934 = vmatpush2.msra.mxu0 0.0
    %935 = vmatprep.subr.mxu0 0.0
    %936 = vmatpush2.msra.mxu0 0.0
    %937 = vmatprep.subr.mxu0 0.0
    %938 = vmatpush2.msra.mxu0 0.0
    %939 = vmatprep.subr.mxu0 0.0
    %940 = vmatpush2.msra.mxu0 0.0
    %941 = vmatprep.subr.mxu0 0.0
    %942 = vmatpush2.msra.mxu0 0.0
    %943 = vmatprep.subr.mxu0 0.0
    %944 = vmatpush2.msra.mxu0 0.0
    %945 = vmatprep.subr.mxu0 0.0
    %946 = vmatpush2.msra.mxu0 0.0
    %947 = vmatprep.subr.mxu0 0.0
    %948 = vmatpush2.msra.mxu0 0.0
    %949 = vmatprep.subr.mxu0 0.0
    %950 = vmatpush2.msra.mxu0 0.0
    %951 = vmatprep.subr.mxu0 0.0
    %952 = vmatpush2.msra.mxu0 0.0
    %953 = vmatprep.mubr.f32.mxu0 0.0
    %954 = vmatmul.mubr.f32.gmra.mxu0 %v884
    %v955 = vpop.f32.mrf.mxu0
    %v956 = vadd.f32 0.0, %v955
    %v957 = vpop.f32.mrf.mxu0
    %958 = vmatprep.mubr.f32.mxu0 0.0
    %959 = vmatmul.mubr.f32.gmra.mxu0 %v887
    %v960 = vpop.f32.mrf.mxu0
    %v961 = vadd.f32 0.0, %v960
    %v962 = vpop.f32.mrf.mxu0
    %963 = vdwg.mxu0
    %v964 = vadd.f32 %v61, %v956
    %v965 = vadd.f32 %v62, %v961
    %v966 = vadd.f32 %v964, %v116
    %v967 = vadd.f32 %v965, %v116
    %vm968 = vcmask 195584
    %969 = vst.msk [vmem:[#allocation7] sm:$0xff] %vm968, %v966
    %970 = vst.msk [vmem:[#allocation7 + $0x8] sm:$0xff] %vm968, %v967
    // Predicated region
    $region46: #{tpu_custom_call.1} parent=1 // pred_check
      _
    $region47: #{tpu_custom_call.1} parent=1 // pred_check_branch
      %972 = sbr.rel (0) target = $region49
    $region48: #{tpu_custom_call.1} parent=1 // pred_region
      %s974 = ssub.s32 256, 256
      %975 = vsyncadd [#allocation4], %s974
      %s976 = sshll.u32 [#allocation7], 4
      %s977 = int_to_ptr.vmem [resolvable:$true] %s976
      %982 = dma.vmem_to_hbm [thread:$0]  %s977, 256, %s9, [#allocation4], 128, 128, 8
    $region49: #{tpu_custom_call.1} parent=1 // pred_fallthru
      _
    // Predicated region
    $region50: #{tpu_custom_call.1} parent=1 // pred_check
      _
    $region51: #{tpu_custom_call.1} parent=1 // pred_check_branch
      %984 = sbr.rel (0) target = $region53
    $region52: #{tpu_custom_call.1} parent=1 // pred_region
      %985 = dma.done [#allocation4], 256
    $region53: #{tpu_custom_call.1} parent=1 // pred_fallthru
      _
    %986 = vsyncpa [#allocation3], 1
    %987 = vsyncpa [#allocation6], 1
    %988 = vsyncpa [#allocation4], 1

</llo_original>
